<compile_context>
chip_gen: v6e
topology: v6e:2x2x1
jax: 0.10.0
libtpu: 0.0.40
codegen_flags: <defaults>
</compile_context>

<pallas_src>
import numpy as np
import jax
import jax.numpy as jnp
from jax.experimental import pallas as pl
from jax.experimental.pallas import tpu as pltpu

SIZES = (1, 2, 3, 6)          # AdaptiveAvgPool2d output sizes from the module
P_PAD = 64                    # 1+4+9+36 = 50 pooled "pixels", padded to 64


# ---------------------------------------------------------------------------
# Operator builders: adaptive avg-pool and bilinear upsample (align_corners=True)
# are exact linear operators on the flattened spatial axis.
# ---------------------------------------------------------------------------
def adaptive_pool_matrix(in_size, out_size):
    P = np.zeros((out_size, in_size), dtype=np.float32)
    for i in range(out_size):
        start = (i * in_size) // out_size
        end = -((-(i + 1) * in_size) // out_size)       # ceil((i+1)*in/out)
        P[i, start:end] = 1.0 / float(end - start)
    return P


def bilinear_upsample_matrix(src_size, dst_size):
    U = np.zeros((dst_size, src_size), dtype=np.float32)
    if src_size == 1:
        U[:, 0] = 1.0
        return U
    scale = (src_size - 1) / (dst_size - 1)
    for t in range(dst_size):
        src = t * scale
        i0 = min(int(np.floor(src)), src_size - 1)
        i1 = min(i0 + 1, src_size - 1)
        f = src - i0
        U[t, i0] += 1.0 - f
        U[t, i1] += f
    return U


def build_fused_matrices(H, W, Co):
    """A_all (HW,P) bf16, U_all (P,HW) bf16, mask (4Co,P) bf16 (branch indicator)."""
    HW = H * W
    A_all = np.zeros((HW, P_PAD), dtype=np.float32)
    U_all = np.zeros((P_PAD, HW), dtype=np.float32)
    mask = np.zeros((4 * Co, P_PAD), dtype=np.float32)
    off = 0
    for bi, s in enumerate(SIZES):
        Ph = adaptive_pool_matrix(H, s)
        Pw = adaptive_pool_matrix(W, s)
        A2 = np.einsum("ih,jw->ijhw", Ph, Pw).reshape(s * s, HW)
        A_all[:, off:off + s * s] = A2.T
        Uh = bilinear_upsample_matrix(s, H)
        Uw = bilinear_upsample_matrix(s, W)
        U2 = np.einsum("hi,wj->ijhw", Uh, Uw).reshape(s * s, HW)
        U_all[off:off + s * s, :] = U2
        mask[bi * Co:(bi + 1) * Co, off:off + s * s] = 1.0
        off += s * s
    return (jnp.asarray(A_all, dtype=jnp.bfloat16),
            jnp.asarray(U_all, dtype=jnp.bfloat16),
            jnp.asarray(mask, dtype=jnp.bfloat16))


# ---------------------------------------------------------------------------
# Deterministic synthetic parameters: conv(1x1, bias=False) -> BN(eval) folded.
# ---------------------------------------------------------------------------
def make_params(C, key):
    Co = C // 4
    eps = 1e-5
    keys = jax.random.split(key, 4)
    W_stack = np.zeros((4 * Co, C), dtype=np.float32)
    b_vec = np.zeros((4 * Co,), dtype=np.float32)
    for bi in range(4):
        w = np.asarray(jax.random.normal(keys[bi], (Co, C), dtype=jnp.float32)) * 0.1
        gamma = 1.0 + 0.05 * np.arange(Co, dtype=np.float32)
        beta = 0.02 * np.arange(Co, dtype=np.float32) - 0.05
        running_mean = np.zeros((Co,), dtype=np.float32)
        running_var = np.ones((Co,), dtype=np.float32)
        scale = gamma / np.sqrt(running_var + eps)
        W_stack[bi * Co:(bi + 1) * Co] = scale[:, None] * w
        b_vec[bi * Co:(bi + 1) * Co] = beta - running_mean * scale
    return jnp.asarray(W_stack), jnp.asarray(b_vec)     # f32 (C,C), f32 (C,)


def _pick_c_tile(C, target=256):
    """Largest multiple-of-8 divisor of C that is <= target (fallback: C)."""
    best = C
    for ct in range(8, min(C, target) + 1, 8):
        if C % ct == 0:
            best = ct
    return best


# ---------------------------------------------------------------------------
# Pallas kernel: two-phase channel streaming, output written in concat layout.
# ---------------------------------------------------------------------------
def pyramid_pooling(x_nchw, A_all, U_all, W_stack, bias_b, mask_b, *, c_tile=None):
    N, C, H, W = x_nchw.shape
    HW = H * W
    P = A_all.shape[1]
    assert C % 4 == 0, "in_channels must be divisible by 4"
    assert C % 8 == 0, "in_channels must be divisible by 8 (sublane alignment)"
    assert W_stack.shape == (C, C)
    if c_tile is None:
        c_tile = _pick_c_tile(C)
    assert C % c_tile == 0 and c_tile % 8 == 0
    n_ct = C // c_tile

    x_flat = x_nchw.reshape(N, C, HW)        # no padding of HW (exact last dim)

    def kernel(x_ref, a_ref, w_ref, b_ref, m_ref, u_ref, o_ref, pooled_ref, copy_sem):
        s = pl.program_id(1)

        @pl.when(s < n_ct)
        def _phase0():
            # bit-exact x passthrough: DMA the whole x block into the whole out
            # block (channels [s*c_tile, (s+1)*c_tile) of the output), overlapped
            # with the pool matmul below.
            cp = pltpu.make_async_copy(x_ref, o_ref, copy_sem)
            cp.start()
            xt = x_ref[0]                                            # (c_tile, HW) f32
            pt = jnp.dot(xt.astype(jnp.bfloat16), a_ref[...],
                         preferred_element_type=jnp.float32)          # (c_tile, P)
            c0 = pl.multiple_of(s * c_tile, c_tile)
            pooled_ref[pl.ds(c0, c_tile), :] = pt                     # persist f32
            cp.wait()

        @pl.when(s >= n_ct)
        def _phase1():
            # fused 1x1 conv (+folded BN) for this output-channel tile, f32 matmul
            z = jnp.dot(w_ref[...], pooled_ref[...],
                        preferred_element_type=jnp.float32)            # (c_tile, P)
            z = jnp.maximum(z + b_ref[...].astype(jnp.float32), 0.0)   # +bias, ReLU
            zb = z.astype(jnp.bfloat16) * m_ref[...]     # zero off-branch columns
            feat = jnp.dot(zb, u_ref[...],
                           preferred_element_type=jnp.float32)          # (c_tile, HW)
            o_ref[0] = feat.astype(o_ref.dtype)

    flops = N * (2 * C * HW * P + 2 * C * C * P + 2 * C * P * HW)
    bytes_accessed = N * 3 * C * HW * 4 + int(
        A_all.size * 2 + U_all.size * 2 + W_stack.size * 4
        + bias_b.size * 2 + mask_b.size * 2)

    out = pl.pallas_call(
        kernel,
        out_shape=jax.ShapeDtypeStruct((N, 2 * C, HW), jnp.float32),
        grid_spec=pltpu.PrefetchScalarGridSpec(
            num_scalar_prefetch=0,
            grid=(N, 2 * n_ct),
            in_specs=[
                # x: channel tile s in phase 0; pinned to the last tile in phase 1
                # (same block index as the previous step => no re-fetch).
                pl.BlockSpec((1, c_tile, HW),
                             lambda n, s: (n, jnp.minimum(s, n_ct - 1), 0)),
                pl.BlockSpec((HW, P), lambda n, s: (0, 0)),        # pool operator bf16
                pl.BlockSpec((c_tile, C),
                             lambda n, s: (jnp.maximum(s - n_ct, 0), 0)),  # W tile f32
                pl.BlockSpec((c_tile, P),
                             lambda n, s: (jnp.maximum(s - n_ct, 0), 0)),  # bias bf16
                pl.BlockSpec((c_tile, P),
                             lambda n, s: (jnp.maximum(s - n_ct, 0), 0)),  # mask bf16
                pl.BlockSpec((P, HW), lambda n, s: (0, 0)),        # upsample op bf16
            ],
            # output channel blocks: s < n_ct -> x passthrough, s >= n_ct -> feat
            out_specs=pl.BlockSpec((1, c_tile, HW), lambda n, s: (n, s, 0)),
            scratch_shapes=[pltpu.VMEM((C, P), jnp.float32),   # persistent pooled
                            pltpu.SemaphoreType.DMA(())],       # passthrough DMA sem
        ),
        compiler_params=pltpu.CompilerParams(
            # batch axis parallel (megacore); phase/channel axis is sequential
            # because phase 1 consumes the pooled scratch written in phase 0.
            dimension_semantics=("parallel", "arbitrary"),
            vmem_limit_bytes=48 * 1024 * 1024),   # headroom under v7x's 64 MiB
        cost_estimate=pl.CostEstimate(flops=flops, transcendentals=0,
                                      bytes_accessed=bytes_accessed),
    )(x_flat, A_all, W_stack, bias_b, mask_b, U_all)

    return out.reshape(N, 2 * C, H, W)


# ---------------------------------------------------------------------------
# Independent f32 reference: per-branch AdaptiveAvgPool2d -> 1x1 conv(+folded BN)
# -> ReLU -> bilinear(align_corners=True) -> concat.  Not built from A_all/U_all.
# ---------------------------------------------------------------------------
def reference_f32(x, W_stack, b_vec):
    N, C, H, W = x.shape
    Co = C // 4
    x = x.astype(np.float64)
    outs = [x]
    for bi, s in enumerate(SIZES):
        Wb = W_stack[bi * Co:(bi + 1) * Co].astype(np.float64)
        bb = b_vec[bi * Co:(bi + 1) * Co].astype(np.float64)
        pooled = np.zeros((N, C, s, s))
        for i in range(s):
            h0, h1 = (i * H) // s, -((-(i + 1) * H) // s)
            for j in range(s):
                w0, w1 = (j * W) // s, -((-(j + 1) * W) // s)
                pooled[:, :, i, j] = x[:, :, h0:h1, w0:w1].mean(axis=(2, 3))
        z = np.einsum("oc,ncij->noij", Wb, pooled) + bb[None, :, None, None]
        z = np.maximum(z, 0.0)
        feat = np.zeros((N, Co, H, W))
        for h in range(H):
            for w in range(W):
                if s == 1:
                    feat[:, :, h, w] = z[:, :, 0, 0]
                else:
                    sy = h * (s - 1) / (H - 1)
                    sx = w * (s - 1) / (W - 1)
                    i0 = min(int(np.floor(sy)), s - 1); i1 = min(i0 + 1, s - 1)
                    j0 = min(int(np.floor(sx)), s - 1); j1 = min(j0 + 1, s - 1)
                    fy, fx = sy - i0, sx - j0
                    feat[:, :, h, w] = ((1 - fy) * (1 - fx) * z[:, :, i0, j0]
                                        + (1 - fy) * fx * z[:, :, i0, j1]
                                        + fy * (1 - fx) * z[:, :, i1, j0]
                                        + fy * fx * z[:, :, i1, j1])
        outs.append(feat)
    return np.concatenate(outs, axis=1).astype(np.float32)


if __name__ == "__main__":
    N, C, H, W = 2, 32, 16, 16
    key = jax.random.PRNGKey(0)
    kx, kw = jax.random.split(key)
    x = jax.random.normal(kx, (N, C, H, W), dtype=jnp.float32)

    A_all, U_all, mask_b = build_fused_matrices(H, W, C // 4)
    W_stack, b_vec = make_params(C, kw)
    bias_b = jnp.broadcast_to(b_vec[:, None], (C, P_PAD)).astype(jnp.bfloat16)

    # c_tile=16 exercises the multi-tile two-phase streaming path (n_ct=2).
    out = pyramid_pooling(x, A_all, U_all, W_stack, bias_b, mask_b, c_tile=16)
    out = jax.block_until_ready(out)
    out_np = np.asarray(out)

    ref = reference_f32(np.asarray(x), np.asarray(W_stack), np.asarray(b_vec))
    assert out_np.shape == (N, 2 * C, H, W), out_np.shape
    # x passthrough (first C channels) must be bit-exact (DMA copy)
    assert np.array_equal(out_np[:, :C], np.asarray(x)), "passthrough mismatch"
    assert np.allclose(out_np, ref, atol=2e-2, rtol=2e-2), (
        "kernel mismatch vs independent f32 reference: max err %.3e"
        % np.max(np.abs(out_np - ref)))

    print("KERNEL_OK")
</pallas_src>

<mosaic_0001>
module attributes {stable_mosaic.version = 11 : i64} {
  func.func @kernel(%arg0: i32, %arg1: i32, %arg2: memref<1x16x256xf32, #tpu.memory_space<vmem>>, %arg3: memref<256x64xbf16, #tpu.memory_space<vmem>>, %arg4: memref<16x32xf32, #tpu.memory_space<vmem>>, %arg5: memref<16x64xbf16, #tpu.memory_space<vmem>>, %arg6: memref<16x64xbf16, #tpu.memory_space<vmem>>, %arg7: memref<64x256xbf16, #tpu.memory_space<vmem>>, %arg8: memref<1x16x256xf32, #tpu.memory_space<vmem>>, %arg9: memref<32x64xf32, #tpu.memory_space<vmem>>, %arg10: memref<!tpu.dma_semaphore, #tpu.memory_space<semaphore_mem>>) attributes {dimension_semantics = [#tpu.dimension_semantics<parallel>, #tpu.dimension_semantics<arbitrary>], iteration_bounds = array<i64: 2, 4>, scalar_prefetch = 0 : i64, scratch_operands = 2 : i64, tpu.core_type = #tpu.core_type<tc>, window_params = [{transform_indices = @transform_0, window_bounds = array<i64: 1, 16, 256>}, {pipeline_mode = #tpu.pipeline_mode<synchronous>, transform_indices = @transform_1, window_bounds = array<i64: 256, 64>}, {transform_indices = @transform_2, window_bounds = array<i64: 16, 32>}, {transform_indices = @transform_3, window_bounds = array<i64: 16, 64>}, {transform_indices = @transform_4, window_bounds = array<i64: 16, 64>}, {pipeline_mode = #tpu.pipeline_mode<synchronous>, transform_indices = @transform_5, window_bounds = array<i64: 64, 256>}, {transform_indices = @transform_6, window_bounds = array<i64: 1, 16, 256>}]} {
    %c2_i32 = arith.constant 2 : i32
    %0 = arith.cmpi slt, %arg1, %c2_i32 : i32
    %1 = arith.extui %0 : i1 to i32
    %c0_i32 = arith.constant 0 : i32
    %2 = arith.cmpi ne, %1, %c0_i32 : i32
    scf.if %2 {
      tpu.enqueue_dma source(%arg2 : memref<1x16x256xf32, #tpu.memory_space<vmem>>) target(%arg8 : memref<1x16x256xf32, #tpu.memory_space<vmem>>) target_semaphore(%arg10 : memref<!tpu.dma_semaphore, #tpu.memory_space<semaphore_mem>>)
      %c0 = arith.constant 0 : index
      %c0_2 = arith.constant 0 : index
      %c0_3 = arith.constant 0 : index
      %6 = vector.load %arg2[%c0, %c0_2, %c0_3] : memref<1x16x256xf32, #tpu.memory_space<vmem>>, vector<1x16x256xf32>
      %7 = vector.shape_cast %6 : vector<1x16x256xf32> to vector<16x256xf32>
      %8 = arith.truncf %7 : vector<16x256xf32> to vector<16x256xbf16>
      %c0_4 = arith.constant 0 : index
      %c0_5 = arith.constant 0 : index
      %9 = vector.load %arg3[%c0_4, %c0_5] : memref<256x64xbf16, #tpu.memory_space<vmem>>, vector<256x64xbf16>
      %cst = arith.constant dense<0.000000e+00> : vector<16x64xf32>
      %10 = tpu.matmul %8, %9, %cst {dimension_numbers = #tpu.dot_dimension_numbers<[1], [0], [0], [1], [0, 0, 1, 1], [], []>} : vector<16x256xbf16>, vector<256x64xbf16>, vector<16x64xf32> -> vector<16x64xf32>
      %c16_i32 = arith.constant 16 : i32
      %11 = arith.muli %arg1, %c16_i32 : i32
      %12 = tpu.assume_multiple %11, 16 : i32
      %13 = arith.index_cast %12 : i32 to index
      %c0_6 = arith.constant 0 : index
      %14 = vector.load %arg9[%13, %c0_6] : memref<32x64xf32, #tpu.memory_space<vmem>>, vector<16x64xf32>
      tpu.vector_store %arg9[%13, %c0_6], %10 {strides = array<i32>} : memref<32x64xf32, #tpu.memory_space<vmem>>, vector<16x64xf32>,
      tpu.wait_dma2 semaphore(%arg10 : memref<!tpu.dma_semaphore, #tpu.memory_space<semaphore_mem>>) src(%arg2 : memref<1x16x256xf32, #tpu.memory_space<vmem>>) dst(%arg8 : memref<1x16x256xf32, #tpu.memory_space<vmem>>)
    } else {
    }
    %c2_i32_0 = arith.constant 2 : i32
    %3 = arith.cmpi sge, %arg1, %c2_i32_0 : i32
    %4 = arith.extui %3 : i1 to i32
    %c0_i32_1 = arith.constant 0 : i32
    %5 = arith.cmpi ne, %4, %c0_i32_1 : i32
    scf.if %5 {
      %c0 = arith.constant 0 : index
      %c0_2 = arith.constant 0 : index
      %6 = vector.load %arg4[%c0, %c0_2] : memref<16x32xf32, #tpu.memory_space<vmem>>, vector<16x32xf32>
      %c0_3 = arith.constant 0 : index
      %c0_4 = arith.constant 0 : index
      %7 = vector.load %arg9[%c0_3, %c0_4] : memref<32x64xf32, #tpu.memory_space<vmem>>, vector<32x64xf32>
      %cst = arith.constant dense<0.000000e+00> : vector<16x64xf32>
      %8 = tpu.matmul %6, %7, %cst {dimension_numbers = #tpu.dot_dimension_numbers<[1], [0], [0], [1], [0, 0, 1, 1], [], []>} : vector<16x32xf32>, vector<32x64xf32>, vector<16x64xf32> -> vector<16x64xf32>
      %c0_5 = arith.constant 0 : index
      %c0_6 = arith.constant 0 : index
      %9 = vector.load %arg5[%c0_5, %c0_6] : memref<16x64xbf16, #tpu.memory_space<vmem>>, vector<16x64xbf16>
      %10 = arith.extf %9 : vector<16x64xbf16> to vector<16x64xf32>
      %11 = arith.addf %8, %10 : vector<16x64xf32>
      %cst_7 = arith.constant 0.000000e+00 : f32
      %12 = vector.broadcast %cst_7 : f32 to vector<16x64xf32>
      %13 = arith.maximumf %11, %12 : vector<16x64xf32>
      %14 = arith.truncf %13 : vector<16x64xf32> to vector<16x64xbf16>
      %c0_8 = arith.constant 0 : index
      %c0_9 = arith.constant 0 : index
      %15 = vector.load %arg6[%c0_8, %c0_9] : memref<16x64xbf16, #tpu.memory_space<vmem>>, vector<16x64xbf16>
      %16 = arith.mulf %14, %15 : vector<16x64xbf16>
      %c0_10 = arith.constant 0 : index
      %c0_11 = arith.constant 0 : index
      %17 = vector.load %arg7[%c0_10, %c0_11] : memref<64x256xbf16, #tpu.memory_space<vmem>>, vector<64x256xbf16>
      %cst_12 = arith.constant dense<0.000000e+00> : vector<16x256xf32>
      %18 = tpu.matmul %16, %17, %cst_12 {dimension_numbers = #tpu.dot_dimension_numbers<[1], [0], [0], [1], [0, 0, 1, 1], [], []>} : vector<16x64xbf16>, vector<64x256xbf16>, vector<16x256xf32> -> vector<16x256xf32>
      %c0_13 = arith.constant 0 : index
      %c0_14 = arith.constant 0 : index
      %c0_15 = arith.constant 0 : index
      %19 = vector.load %arg8[%c0_13, %c0_14, %c0_15] : memref<1x16x256xf32, #tpu.memory_space<vmem>>, vector<1x16x256xf32>
      %20 = vector.shape_cast %19 : vector<1x16x256xf32> to vector<16x256xf32>
      %21 = vector.shape_cast %18 : vector<16x256xf32> to vector<1x16x256xf32>
      tpu.vector_store %arg8[%c0_13, %c0_14, %c0_15], %21 {strides = array<i32>} : memref<1x16x256xf32, #tpu.memory_space<vmem>>, vector<1x16x256xf32>,
    } else {
    }
    return
  }
  func.func @transform_0(%arg0: i32, %arg1: i32) -> (i32, i32, i32) {
    %c1_i32 = arith.constant 1 : i32
    %0 = arith.minsi %arg1, %c1_i32 : i32
    %c0_i32 = arith.constant 0 : i32
    %c0_i32_0 = arith.constant 0 : i32
    return %arg0, %0, %c0_i32 : i32, i32, i32
  }
  func.func @transform_1(%arg0: i32, %arg1: i32) -> (i32, i32) {
    %c0_i32 = arith.constant 0 : i32
    %c0_i32_0 = arith.constant 0 : i32
    %c0_i32_1 = arith.constant 0 : i32
    return %c0_i32, %c0_i32_0 : i32, i32
  }
  func.func @transform_2(%arg0: i32, %arg1: i32) -> (i32, i32) {
    %c2_i32 = arith.constant 2 : i32
    %0 = arith.subi %arg1, %c2_i32 : i32
    %c0_i32 = arith.constant 0 : i32
    %1 = arith.maxsi %0, %c0_i32 : i32
    %c0_i32_0 = arith.constant 0 : i32
    %c0_i32_1 = arith.constant 0 : i32
    return %1, %c0_i32_0 : i32, i32
  }
  func.func @transform_3(%arg0: i32, %arg1: i32) -> (i32, i32) {
    %c2_i32 = arith.constant 2 : i32
    %0 = arith.subi %arg1, %c2_i32 : i32
    %c0_i32 = arith.constant 0 : i32
    %1 = arith.maxsi %0, %c0_i32 : i32
    %c0_i32_0 = arith.constant 0 : i32
    %c0_i32_1 = arith.constant 0 : i32
    return %1, %c0_i32_0 : i32, i32
  }
  func.func @transform_4(%arg0: i32, %arg1: i32) -> (i32, i32) {
    %c2_i32 = arith.constant 2 : i32
    %0 = arith.subi %arg1, %c2_i32 : i32
    %c0_i32 = arith.constant 0 : i32
    %1 = arith.maxsi %0, %c0_i32 : i32
    %c0_i32_0 = arith.constant 0 : i32
    %c0_i32_1 = arith.constant 0 : i32
    return %1, %c0_i32_0 : i32, i32
  }
  func.func @transform_5(%arg0: i32, %arg1: i32) -> (i32, i32) {
    %c0_i32 = arith.constant 0 : i32
    %c0_i32_0 = arith.constant 0 : i32
    %c0_i32_1 = arith.constant 0 : i32
    return %c0_i32, %c0_i32_0 : i32, i32
  }
  func.func @transform_6(%arg0: i32, %arg1: i32) -> (i32, i32, i32) {
    %c0_i32 = arith.constant 0 : i32
    %c0_i32_0 = arith.constant 0 : i32
    return %arg0, %arg1, %c0_i32 : i32, i32, i32
  }
}

</mosaic_0001>

<llo_original>
// kernel: tpu_custom_call.1
$region0: #{tpu_custom_call.1}
  #allocation0 [shape = 'u32[]', space=smem, size = 0x4, offset = 0x4, fixed_abs, tag = 'smem constant byte address 0x4 - core index']
  #allocation1 [shape = 'u32[144,128]{1,0:T(1,128)}', space=vmem, size = 0x12000, scoped, tag = 'internal scratch']
  #allocation2 [shape = 'f32[32,64]{1,0:T(8,128)}', space=vmem, size = 0x4000, scoped, tag = 'scratch operand']
  #allocation3 [shape = 's32[1]{0}', space=sflag, size = 0x4, scoped, tag = 'scratch operand']
  #allocation11 [shape = 's32[]', space=sflag, size = 0x4, offset = 0, fixed_abs, tag = 'sflag constant byte address 0x0 - dummy sync flag']
  %s0 = inlined_call_operand.vmem [shape: f32[2,32,256], index: 0, kind: input, shape index: {}]
  %s1 = inlined_call_operand.vmem [shape: bf16[256,64], index: 1, kind: input, shape index: {}]
  %s2 = inlined_call_operand.hbm [shape: f32[32,32], index: 2, kind: input, shape index: {}]
  %s3 = inlined_call_operand.hbm [shape: bf16[32,64], index: 3, kind: input, shape index: {}]
  %s4 = inlined_call_operand.hbm [shape: bf16[32,64], index: 4, kind: input, shape index: {}]
  %s5 = inlined_call_operand.vmem [shape: bf16[64,256], index: 5, kind: input, shape index: {}]
  %s6 = inlined_call_operand.hbm [shape: f32[2,64,256], index: 6, kind: output, shape index: {}]
  %s7 = sld [smem:[#allocation0]]
  $region111: #{tpu_custom_call.1} parent=0
    _
  %s9 = ssub.s32 1, %s7
  %s10 = scalar_select 0, %s9, %s7
  $region1: #{tpu_custom_call.1} parent=0
    #allocation4 [shape = 'u8[16384]{0}', space=vmem, size = 0x4000, scoped, tag = 'input window, operand 2']
    #allocation5 [shape = 's32[2]{0}', space=sflag, size = 0x8, scoped, tag = 'scoped memory for tpu_custom_call.1']
    #allocation6 [shape = 's32[2]{0}', space=sflag, size = 0x8, scoped, tag = 'scoped memory for tpu_custom_call.1']
    #allocation7 [shape = 'u8[8192]{0}', space=vmem, size = 0x2000, scoped, tag = 'input window, operand 3']
    #allocation8 [shape = 's32[2]{0}', space=sflag, size = 0x8, scoped, tag = 'scoped memory for tpu_custom_call.1']
    #allocation9 [shape = 'u8[8192]{0}', space=vmem, size = 0x2000, scoped, tag = 'input window, operand 4']
    #allocation10 [shape = 'u8[32768]{0}', space=vmem, size = 0x8000, scoped, tag = 'output window, operand 0']
    %11 = vsyncpa [#allocation5], 0
    %s12 = scalar_lea.sflag [#allocation5], 1
    %13 = vsyncpa %s12, 0
    %14 = vsyncpa [#allocation8], 0
    %s15 = scalar_lea.sflag [#allocation8], 1
    %16 = vsyncpa %s15, 0
    %17 = vsyncpa [#allocation6], 0
    %s18 = scalar_lea.sflag [#allocation6], 1
    %19 = vsyncpa %s18, 0
    loop: start=0, step=1, limit=10
    $region2: #{tpu_custom_call.1} parent=1 // loop_pre_header
      _
    $region3: #{tpu_custom_call.1} parent=1 // loop_header
      %s21 = sphi 0, %s25
      %p22 = scmp.ge.s32.totalorder %s21, 10
      %s28 = sphi 0, %s40
      %s29 = sphi 0, %s36
      %s30 = sphi 0, %s28
      %s31 = sphi 0, %s29
      %s32 = sphi 0, %s30
      %s33 = sphi 0, %s31
      %s49 = sphi 0, %s51
      %s52 = sphi 0, %s49
      %s53 = sphi 0, %s52
      %s69 = sphi 0, %s53
      %s73 = sphi 0, %s73
      %s75 = sphi 0, %s73
      %s76 = sphi 0, %s75
      %s90 = sphi 0, %s76
      %s102 = sphi 0, %s104
      %s105 = sphi 0, %s102
      %s106 = sphi 0, %s105
      %s122 = sphi 0, %s106
      %s134 = sphi 0, %s136
      %s137 = sphi 0, %s134
      %s138 = sphi 0, %s137
      %s154 = sphi 0, %s138
      %s166 = sphi 0, %s168
      %s169 = sphi 0, %s166
      %s170 = sphi 0, %s169
      %s186 = sphi 0, %s170
      %s190 = sphi 0, %s190
      %s192 = sphi 0, %s190
      %s193 = sphi 0, %s192
      %s207 = sphi 0, %s193
      %s215 = sphi 0, %s217
      %s218 = sphi 0, %s215
      %s219 = sphi 0, %s218
      %s235 = sphi 0, %s219
    $region4: #{tpu_custom_call.1} parent=1 // loop_header_branch
      %24 = sbr.rel (%p22) target = $region8
    $region5: #{tpu_custom_call.1} parent=1 // loop_body
      %s26 = ssub.s32 %s21, 1
      %s27 = ssub.s32 %s21, 2
      %s34 = sadd.s32 1, %s29
      %p35 = scmp.ge.s32.totalorder %s34, 4
      %s36 = scalar_select %p35, 0, %s34
      %s37 = sadd.s32 1, %s28
      %s38 = scalar_select %p35, %s37, %s28
      %p39 = scmp.ge.s32.totalorder %s38, 2
      %s40 = scalar_select %p39, 0, %s38
      %p41 = scmp.lt.s32.totalorder %s29, 1
      %s42 = scalar_select %p41, %s29, 1
      %p43 = scmp.lt.s32.totalorder %s36, 1
      %s44 = scalar_select %p43, %s36, 1
      %s45 = ssub.s32 %s28, %s40
      %s46 = ssub.s32 %s42, %s44
      %s47 = sor.u32 %s45, %s46
      %p48 = scmp.eq.s32.totalorder %s47, 0
      %s50 = sadd.s32 %s49, 1
      %s51 = scalar_select %p48, %s49, %s50
      %p54 = pneg %p48
      %p55 = scmp.eq.s32.totalorder %s21, 7
      %p56 = por %p54, %p55
      %p57 = scmp.ne.s32.totalorder %s49, %s52
      %p58 = scmp.eq.s32.totalorder %s21, 0
      %p59 = por %p57, %p58
      %p60 = scmp.ne.s32.totalorder %s49, %s52
      %p61 = scmp.eq.s32.totalorder %s26, 7
      %p62 = por %p60, %p61
      %p63 = scmp.ne.s32.totalorder %s52, %s53
      %p64 = scmp.eq.s32.totalorder %s26, 0
      %p65 = por %p63, %p64
      %p66 = scmp.ne.s32.totalorder %s52, %s53
      %p67 = scmp.eq.s32.totalorder %s27, 7
      %p68 = por %p66, %p67
      %p70 = scmp.ne.s32.totalorder %s53, %s69
      %p71 = scmp.eq.s32.totalorder %s27, 0
      %p72 = por %p70, %p71
      %s74 = sadd.s32 %s73, 1
      %p77 = scmp.eq.s32.totalorder %s21, 7
      %p78 = scmp.ne.s32.totalorder %s73, %s75
      %p79 = scmp.eq.s32.totalorder %s21, 0
      %p80 = por %p78, %p79
      %p81 = scmp.ne.s32.totalorder %s73, %s75
      %p82 = scmp.eq.s32.totalorder %s26, 7
      %p83 = por %p81, %p82
      %p84 = scmp.ne.s32.totalorder %s75, %s76
      %p85 = scmp.eq.s32.totalorder %s26, 0
      %p86 = por %p84, %p85
      %p87 = scmp.ne.s32.totalorder %s75, %s76
      %p88 = scmp.eq.s32.totalorder %s27, 7
      %p89 = por %p87, %p88
      %p91 = scmp.ne.s32.totalorder %s76, %s90
      %p92 = scmp.eq.s32.totalorder %s27, 0
      %p93 = por %p91, %p92
      %s94 = ssub.s32 %s29, 2
      %p95 = scmp.gt.s32.totalorder %s94, 0
      %s96 = scalar_select %p95, %s94, 0
      %s97 = ssub.s32 %s36, 2
      %p98 = scmp.gt.s32.totalorder %s97, 0
      %s99 = scalar_select %p98, %s97, 0
      %s100 = ssub.s32 %s96, %s99
      %p101 = scmp.eq.s32.totalorder %s100, 0
      %s103 = sadd.s32 %s102, 1
      %s104 = scalar_select %p101, %s102, %s103
      %p107 = pneg %p101
      %p108 = scmp.eq.s32.totalorder %s21, 7
      %p109 = por %p107, %p108
      %p110 = scmp.ne.s32.totalorder %s102, %s105
      %p111 = scmp.eq.s32.totalorder %s21, 0
      %p112 = por %p110, %p111
      %p113 = scmp.ne.s32.totalorder %s102, %s105
      %p114 = scmp.eq.s32.totalorder %s26, 7
      %p115 = por %p113, %p114
      %p116 = scmp.ne.s32.totalorder %s105, %s106
      %p117 = scmp.eq.s32.totalorder %s26, 0
      %p118 = por %p116, %p117
      %p119 = scmp.ne.s32.totalorder %s105, %s106
      %p120 = scmp.eq.s32.totalorder %s27, 7
      %p121 = por %p119, %p120
      %p123 = scmp.ne.s32.totalorder %s106, %s122
      %p124 = scmp.eq.s32.totalorder %s27, 0
      %p125 = por %p123, %p124
      %s126 = ssub.s32 %s29, 2
      %p127 = scmp.gt.s32.totalorder %s126, 0
      %s128 = scalar_select %p127, %s126, 0
      %s129 = ssub.s32 %s36, 2
      %p130 = scmp.gt.s32.totalorder %s129, 0
      %s131 = scalar_select %p130, %s129, 0
      %s132 = ssub.s32 %s128, %s131
      %p133 = scmp.eq.s32.totalorder %s132, 0
      %s135 = sadd.s32 %s134, 1
      %s136 = scalar_select %p133, %s134, %s135
      %p139 = pneg %p133
      %p140 = scmp.eq.s32.totalorder %s21, 7
      %p141 = por %p139, %p140
      %p142 = scmp.ne.s32.totalorder %s134, %s137
      %p143 = scmp.eq.s32.totalorder %s21, 0
      %p144 = por %p142, %p143
      %p145 = scmp.ne.s32.totalorder %s134, %s137
      %p146 = scmp.eq.s32.totalorder %s26, 7
      %p147 = por %p145, %p146
      %p148 = scmp.ne.s32.totalorder %s137, %s138
      %p149 = scmp.eq.s32.totalorder %s26, 0
      %p150 = por %p148, %p149
      %p151 = scmp.ne.s32.totalorder %s137, %s138
      %p152 = scmp.eq.s32.totalorder %s27, 7
      %p153 = por %p151, %p152
      %p155 = scmp.ne.s32.totalorder %s138, %s154
      %p156 = scmp.eq.s32.totalorder %s27, 0
      %p157 = por %p155, %p156
      %s158 = ssub.s32 %s29, 2
      %p159 = scmp.gt.s32.totalorder %s158, 0
      %s160 = scalar_select %p159, %s158, 0
      %s161 = ssub.s32 %s36, 2
      %p162 = scmp.gt.s32.totalorder %s161, 0
      %s163 = scalar_select %p162, %s161, 0
      %s164 = ssub.s32 %s160, %s163
      %p165 = scmp.eq.s32.totalorder %s164, 0
      %s167 = sadd.s32 %s166, 1
      %s168 = scalar_select %p165, %s166, %s167
      %p171 = pneg %p165
      %p172 = scmp.eq.s32.totalorder %s21, 7
      %p173 = por %p171, %p172
      %p174 = scmp.ne.s32.totalorder %s166, %s169
      %p175 = scmp.eq.s32.totalorder %s21, 0
      %p176 = por %p174, %p175
      %p177 = scmp.ne.s32.totalorder %s166, %s169
      %p178 = scmp.eq.s32.totalorder %s26, 7
      %p179 = por %p177, %p178
      %p180 = scmp.ne.s32.totalorder %s169, %s170
      %p181 = scmp.eq.s32.totalorder %s26, 0
      %p182 = por %p180, %p181
      %p183 = scmp.ne.s32.totalorder %s169, %s170
      %p184 = scmp.eq.s32.totalorder %s27, 7
      %p185 = por %p183, %p184
      %p187 = scmp.ne.s32.totalorder %s170, %s186
      %p188 = scmp.eq.s32.totalorder %s27, 0
      %p189 = por %p187, %p188
      %s191 = sadd.s32 %s190, 1
      %p194 = scmp.eq.s32.totalorder %s21, 7
      %p195 = scmp.ne.s32.totalorder %s190, %s192
      %p196 = scmp.eq.s32.totalorder %s21, 0
      %p197 = por %p195, %p196
      %p198 = scmp.ne.s32.totalorder %s190, %s192
      %p199 = scmp.eq.s32.totalorder %s26, 7
      %p200 = por %p198, %p199
      %p201 = scmp.ne.s32.totalorder %s192, %s193
      %p202 = scmp.eq.s32.totalorder %s26, 0
      %p203 = por %p201, %p202
      %p204 = scmp.ne.s32.totalorder %s192, %s193
      %p205 = scmp.eq.s32.totalorder %s27, 7
      %p206 = por %p204, %p205
      %p208 = scmp.ne.s32.totalorder %s193, %s207
      %p209 = scmp.eq.s32.totalorder %s27, 0
      %p210 = por %p208, %p209
      %s211 = ssub.s32 %s28, %s40
      %s212 = ssub.s32 %s29, %s36
      %s213 = sor.u32 %s211, %s212
      %p214 = scmp.eq.s32.totalorder %s213, 0
      %s216 = sadd.s32 %s215, 1
      %s217 = scalar_select %p214, %s215, %s216
      %p220 = pneg %p214
      %p221 = scmp.eq.s32.totalorder %s21, 7
      %p222 = por %p220, %p221
      %p223 = scmp.ne.s32.totalorder %s215, %s218
      %p224 = scmp.eq.s32.totalorder %s21, 0
      %p225 = por %p223, %p224
      %p226 = scmp.ne.s32.totalorder %s215, %s218
      %p227 = scmp.eq.s32.totalorder %s26, 7
      %p228 = por %p226, %p227
      %p229 = scmp.ne.s32.totalorder %s218, %s219
      %p230 = scmp.eq.s32.totalorder %s26, 0
      %p231 = por %p229, %p230
      %p232 = scmp.ne.s32.totalorder %s218, %s219
      %p233 = scmp.eq.s32.totalorder %s27, 7
      %p234 = por %p232, %p233
      %p236 = scmp.ne.s32.totalorder %s219, %s235
      %p237 = scmp.eq.s32.totalorder %s27, 0
      %p238 = por %p236, %p237
      %p239 = scmp.le.s32.totalorder 1, %s21
      %p240 = scmp.lt.s32.totalorder %s21, 9
      %p241 = pnand %p239, %p240
      %p242 = pneg %p241
      // Predicated region
      $region9: #{tpu_custom_call.1} parent=5 // pred_check
        _
      $region10: #{tpu_custom_call.1} parent=5 // pred_check_branch
        %244 = sbr.rel (%p241) target = $region12
      $region11: #{tpu_custom_call.1} parent=5 // pred_region
        %s245 = ssub.s32 %s21, 1
        // Predicated region
        $region13: #{tpu_custom_call.1} parent=11 // pred_check
          %p246 = pneg %p86
        $region14: #{tpu_custom_call.1} parent=11 // pred_check_branch
          %248 = sbr.rel (%p246) target = $region16
        $region15: #{tpu_custom_call.1} parent=11 // pred_region
          _
        $region16: #{tpu_custom_call.1} parent=11 // pred_fallthru
          _
        // Predicated region
        $region17: #{tpu_custom_call.1} parent=11 // pred_check
          %p249 = pneg %p203
        $region18: #{tpu_custom_call.1} parent=11 // pred_check_branch
          %251 = sbr.rel (%p249) target = $region20
        $region19: #{tpu_custom_call.1} parent=11 // pred_region
          _
        $region20: #{tpu_custom_call.1} parent=11 // pred_fallthru
          _
      $region12: #{tpu_custom_call.1} parent=5 // pred_fallthru
        _
      %p252 = scmp.lt.s32.totalorder %s21, 8
      // Predicated region
      $region21: #{tpu_custom_call.1} parent=5 // pred_check
        %p253 = pneg %p252
      $region22: #{tpu_custom_call.1} parent=5 // pred_check_branch
        %255 = sbr.rel (%p253) target = $region24
      $region23: #{tpu_custom_call.1} parent=5 // pred_region
        // Predicated region
        $region25: #{tpu_custom_call.1} parent=23 // pred_check
          %p256 = pneg %p59
        $region26: #{tpu_custom_call.1} parent=23 // pred_check_branch
          %258 = sbr.rel (%p256) target = $region28
        $region27: #{tpu_custom_call.1} parent=23 // pred_region
          %p259 = scmp.lt.s32.totalorder %s29, 1
          %s260 = scalar_select %p259, %s29, 1
          %s261 = smul.u32 2, %s260
          %p262 = scmp.lt.s32.totalorder %s28, 1
          %s263 = scalar_select %p262, %s28, 1
          %p264 = scmp.lt.s32.totalorder %s261, 3
          %s265 = scalar_select %p264, %s261, 3
          %s266 = smul.addr %s265, 2
          %s267 = smul.addr %s263, 8
          %s268 = sadd.s32 %s266, %s267
          %s269 = smul.addr %s268, 8
          %s270 = scalar_lea.vmem %s0, %s269
          %p271 = scmp.lt.s32.totalorder %s29, 1
          %s272 = scalar_select %p271, %s29, 1
          %s273 = smul.u32 2, %s272
        $region28: #{tpu_custom_call.1} parent=23 // pred_fallthru
          _
        // Predicated region
        $region29: #{tpu_custom_call.1} parent=23 // pred_check
          %p274 = pneg %p112
        $region30: #{tpu_custom_call.1} parent=23 // pred_check_branch
          %276 = sbr.rel (%p274) target = $region32
        $region31: #{tpu_custom_call.1} parent=23 // pred_region
          %s277 = sand.u32 %s102, 1
          %s278 = scalar_lea.sflag [#allocation5], %s277
          %s279 = sand.u32 %s102, 1
          %s280 = smul.addr %s279, 16
          %s281 = scalar_lea.vmem [#allocation4], %s280
          %s282 = ssub.s32 %s29, 2
          %p283 = scmp.gt.s32.totalorder %s282, 0
          %s284 = scalar_select %p283, %s282, 0
          %s285 = smul.u32 2, %s284
          %s287 = ssub.s32 256, 256
          %288 = vsyncadd %s278, %s287
          %s289 = smul.addr %s285, 128
          %s290 = scalar_lea.hbm %s2, %s289
          %s291 = sshll.u32 %s281, 4
          %s292 = int_to_ptr.vmem [resolvable:$true] %s291
          %297 = dma.hbm_to_vmem [thread:$0]  %s290, 256, %s292, %s278, 128, 128, 8
        $region32: #{tpu_custom_call.1} parent=23 // pred_fallthru
          _
        // Predicated region
        $region33: #{tpu_custom_call.1} parent=23 // pred_check
          %p298 = pneg %p144
        $region34: #{tpu_custom_call.1} parent=23 // pred_check_branch
          %300 = sbr.rel (%p298) target = $region36
        $region35: #{tpu_custom_call.1} parent=23 // pred_region
          %s301 = sand.u32 %s21, 1
          %s302 = scalar_lea.sflag [#allocation8], %s301
          %s303 = sand.u32 %s134, 1
          %s304 = smul.addr %s303, 8
          %s305 = scalar_lea.vmem [#allocation7], %s304
          %s306 = ssub.s32 %s29, 2
          %p307 = scmp.gt.s32.totalorder %s306, 0
          %s308 = scalar_select %p307, %s306, 0
          %s309 = smul.u32 2, %s308
          %s311 = ssub.s32 128, 128
          %312 = vsyncadd %s302, %s311
          %s313 = smul.addr %s309, 64
          %s314 = scalar_lea.hbm %s3, %s313
          %s315 = sshll.u32 %s305, 4
          %s316 = int_to_ptr.vmem [resolvable:$true] %s315
          %321 = dma.hbm_to_vmem [thread:$0]  %s314, 128, %s316, %s302, 64, 64, 4
        $region36: #{tpu_custom_call.1} parent=23 // pred_fallthru
          _
        // Predicated region
        $region37: #{tpu_custom_call.1} parent=23 // pred_check
          %p322 = pneg %p176
        $region38: #{tpu_custom_call.1} parent=23 // pred_check_branch
          %324 = sbr.rel (%p322) target = $region40
        $region39: #{tpu_custom_call.1} parent=23 // pred_region
          %s325 = sand.u32 %s21, 1
          %s326 = scalar_lea.sflag [#allocation8], %s325
          %s327 = sand.u32 %s166, 1
          %s328 = smul.addr %s327, 8
          %s329 = scalar_lea.vmem [#allocation9], %s328
          %s330 = ssub.s32 %s29, 2
          %p331 = scmp.gt.s32.totalorder %s330, 0
          %s332 = scalar_select %p331, %s330, 0
          %s333 = smul.u32 2, %s332
          %s335 = ssub.s32 128, 128
          %336 = vsyncadd %s326, %s335
          %s337 = smul.addr %s333, 64
          %s338 = scalar_lea.hbm %s4, %s337
          %s339 = sshll.u32 %s329, 4
          %s340 = int_to_ptr.vmem [resolvable:$true] %s339
          %345 = dma.hbm_to_vmem [thread:$0]  %s338, 128, %s340, %s326, 64, 64, 4
        $region40: #{tpu_custom_call.1} parent=23 // pred_fallthru
          _
      $region24: #{tpu_custom_call.1} parent=5 // pred_fallthru
        _
      %p346 = scmp.le.s32.totalorder 1, %s21
      %p347 = scmp.lt.s32.totalorder %s21, 9
      %p348 = pnand %p346, %p347
      %p349 = pneg %p348
      // Predicated region
      $region41: #{tpu_custom_call.1} parent=5 // pred_check
        _
      $region42: #{tpu_custom_call.1} parent=5 // pred_check_branch
        %351 = sbr.rel (%p348) target = $region44
      $region43: #{tpu_custom_call.1} parent=5 // pred_region
        %s352 = ssub.s32 %s21, 1
        %s353 = sand.u32 %s105, 1
        %s354 = scalar_lea.sflag [#allocation5], %s353
        %s355 = sand.u32 %s105, 1
        %s356 = smul.addr %s355, 16
        %s357 = scalar_lea.vmem [#allocation4], %s356
        // Predicated region
        $region45: #{tpu_custom_call.1} parent=43 // pred_check
          %p358 = pneg %p118
        $region46: #{tpu_custom_call.1} parent=43 // pred_check_branch
          %360 = sbr.rel (%p358) target = $region48
        $region47: #{tpu_custom_call.1} parent=43 // pred_region
          %361 = dma.done %s354, 256
        $region48: #{tpu_custom_call.1} parent=43 // pred_fallthru
          _
        %s362 = sand.u32 %s26, 1
        %s363 = scalar_lea.sflag [#allocation8], %s362
        %s364 = sand.u32 %s137, 1
        %s365 = smul.addr %s364, 8
        %s366 = scalar_lea.vmem [#allocation7], %s365
        // Predicated region
        $region49: #{tpu_custom_call.1} parent=43 // pred_check
          %p367 = pneg %p150
        $region50: #{tpu_custom_call.1} parent=43 // pred_check_branch
          %369 = sbr.rel (%p367) target = $region52
        $region51: #{tpu_custom_call.1} parent=43 // pred_region
          %370 = dma.done %s363, 128
        $region52: #{tpu_custom_call.1} parent=43 // pred_fallthru
          _
        %s371 = sand.u32 %s26, 1
        %s372 = scalar_lea.sflag [#allocation8], %s371
        %s373 = sand.u32 %s169, 1
        %s374 = smul.addr %s373, 8
        %s375 = scalar_lea.vmem [#allocation9], %s374
        // Predicated region
        $region53: #{tpu_custom_call.1} parent=43 // pred_check
          %p376 = pneg %p182
        $region54: #{tpu_custom_call.1} parent=43 // pred_check_branch
          %378 = sbr.rel (%p376) target = $region56
        $region55: #{tpu_custom_call.1} parent=43 // pred_region
          %379 = dma.done %s372, 128
        $region56: #{tpu_custom_call.1} parent=43 // pred_fallthru
          _
        %p380 = scmp.lt.s32.totalorder %s31, 1
        %s381 = scalar_select %p380, %s31, 1
        %s382 = smul.u32 2, %s381
        %p383 = scmp.lt.s32.totalorder %s30, 1
        %s384 = scalar_select %p383, %s30, 1
        %p385 = scmp.lt.s32.totalorder %s382, 3
        %s386 = scalar_select %p385, %s382, 3
        %s387 = smul.addr %s386, 2
        %s388 = smul.addr %s384, 8
        %s389 = sadd.s32 %s387, %s388
        %s390 = smul.addr %s389, 8
        %s391 = scalar_lea.vmem %s0, %s390
        %p392 = pneg %p65
        %p393 = pneg %p62
        %p394 = pneg %p86
        %p395 = pneg %p83
        %s396 = sand.u32 %s105, 1
        %s397 = scalar_lea.sflag [#allocation5], %s396
        %s398 = sand.u32 %s105, 1
        %s399 = smul.addr %s398, 16
        %s400 = scalar_lea.vmem [#allocation4], %s399
        %p401 = pneg %p118
        %p402 = pneg %p115
        %s403 = sand.u32 %s26, 1
        %s404 = scalar_lea.sflag [#allocation8], %s403
        %s405 = sand.u32 %s137, 1
        %s406 = smul.addr %s405, 8
        %s407 = scalar_lea.vmem [#allocation7], %s406
        %p408 = pneg %p150
        %p409 = pneg %p147
        %s410 = sand.u32 %s26, 1
        %s411 = scalar_lea.sflag [#allocation8], %s410
        %s412 = sand.u32 %s169, 1
        %s413 = smul.addr %s412, 8
        %s414 = scalar_lea.vmem [#allocation9], %s413
        %p415 = pneg %p182
        %p416 = pneg %p179
        %p417 = pneg %p203
        %p418 = pneg %p200
        %p419 = pneg %p231
        %p420 = pneg %p228
        %s421 = sand.u32 %s218, 1
        %s422 = scalar_lea.sflag [#allocation6], %s421
        %s423 = sand.u32 %s218, 1
        %s424 = smul.addr %s423, 32
        %s425 = scalar_lea.vmem [#allocation10], %s424
        %p426 = scmp.lt.s32.totalorder %s31, 1
        %s427 = scalar_select %p426, %s31, 1
        %s428 = smul.u32 2, %s427
        %p429 = scmp.lt.s32.totalorder %s30, 1
        %s430 = scalar_select %p429, %s30, 1
        %p431 = scmp.lt.s32.totalorder %s428, 3
        %s432 = scalar_select %p431, %s428, 3
        %s433 = smul.addr %s432, 2
        %s434 = smul.addr %s430, 8
        %s435 = sadd.s32 %s433, %s434
        %s436 = smul.addr %s435, 8
        %s437 = scalar_lea.vmem %s0, %s436
        %p438 = scmp.lt.s32.totalorder %s31, 1
        %s439 = scalar_select %p438, %s31, 1
        %s440 = smul.u32 2, %s439
        %s441 = ssub.s32 %s31, 2
        %p442 = scmp.gt.s32.totalorder %s441, 0
        %s443 = scalar_select %p442, %s441, 0
        %s444 = smul.u32 2, %s443
        %s445 = ssub.s32 %s31, 2
        %p446 = scmp.gt.s32.totalorder %s445, 0
        %s447 = scalar_select %p446, %s445, 0
        %s448 = smul.u32 2, %s447
        %s449 = ssub.s32 %s31, 2
        %p450 = scmp.gt.s32.totalorder %s449, 0
        %s451 = scalar_select %p450, %s449, 0
        %s452 = smul.u32 2, %s451
        %s453 = smul.u32 2, %s31
        %p455 = scmp.lt.s32.totalorder %s31, 2
        // Predicated region
        $region57: #{tpu_custom_call.1} parent=43 // pred_check
          %p456 = pneg %p455
        $region58: #{tpu_custom_call.1} parent=43 // pred_check_branch
          %458 = sbr.rel (%p456) target = $region60
        $region59: #{tpu_custom_call.1} parent=43 // pred_region
          %p460 = scmp.lt.u32.totalorder 32, 8
          %p461 = pneg %p460
          // Predicated region
          $region61: #{tpu_custom_call.1} parent=59 // pred_check
            _
          $region62: #{tpu_custom_call.1} parent=59 // pred_check_branch
            %463 = sbr.rel (%p460) target = $region64
          $region63: #{tpu_custom_call.1} parent=59 // pred_region
            %s479 = sand.u32 32, 7
            %p480 = scmp.eq.s32.totalorder %s479, 0
            // Predicated region
            $region76: #{tpu_custom_call.1} parent=63 // pred_check
              %p481 = pneg %p480
            $region77: #{tpu_custom_call.1} parent=63 // pred_check_branch
              %483 = sbr.rel (%p481) target = $region79
            $region78: #{tpu_custom_call.1} parent=63 // pred_region
              loop: start=0, step=1, limit=1
              $region80: #{tpu_custom_call.1} parent=78 // loop_pre_header
                _
              $region81: #{tpu_custom_call.1} parent=78 // loop_header
                %s485 = sphi 0, %s489
                %p486 = scmp.ge.s32.totalorder %s485, 1
                %s490 = sphi %s437, %s437
                %s491 = sphi %s425, %s425
              $region82: #{tpu_custom_call.1} parent=78 // loop_header_branch
                %488 = sbr.rel (%p486) target = $region86
              $region83: #{tpu_custom_call.1} parent=78 // loop_body
                %v492 = vld [vmem:[%s490] sm:$0xff]
                %493 = vst [vmem:[%s491] sm:$0xff] %v492
                %v494 = vld [vmem:[%s490 + $0x8] sm:$0xff]
                %495 = vst [vmem:[%s491 + $0x8] sm:$0xff] %v494
                %v496 = vld [vmem:[%s490 + $0x10] sm:$0xff]
                %497 = vst [vmem:[%s491 + $0x10] sm:$0xff] %v496
                %v498 = vld [vmem:[%s490 + $0x18] sm:$0xff]
                %499 = vst [vmem:[%s491 + $0x18] sm:$0xff] %v498
              $region84: #{tpu_custom_call.1} parent=78 // loop_footer
                %s489 = sadd.s32 1, %s485
              $region85: #{tpu_custom_call.1} parent=78 // loop_footer_branch
                %484 = sbr.rel target = $region81
              $region86: #{tpu_custom_call.1} parent=78 // loop_exit
                _
            $region79: #{tpu_custom_call.1} parent=63 // pred_fallthru
              _
            %p500 = pneg %p480
            // Predicated region
            $region87: #{tpu_custom_call.1} parent=63 // pred_check
              _
            $region88: #{tpu_custom_call.1} parent=63 // pred_check_branch
              %502 = sbr.rel (%p480) target = $region90
            $region89: #{tpu_custom_call.1} parent=63 // pred_region
              %s503 = sand.u32 32, 7
            $region90: #{tpu_custom_call.1} parent=63 // pred_fallthru
              _
          $region64: #{tpu_custom_call.1} parent=59 // pred_fallthru
            _
          // Predicated region
          $region65: #{tpu_custom_call.1} parent=59 // pred_check
            %p464 = pneg %p460
          $region66: #{tpu_custom_call.1} parent=59 // pred_check_branch
            %466 = sbr.rel (%p464) target = $region68
          $region67: #{tpu_custom_call.1} parent=59 // pred_region
            %s467 = sshll.u32 1, 32
            %s468 = ssub.s32 %s467, 1
            loop: start=0, step=1, limit=1
            $region69: #{tpu_custom_call.1} parent=67 // loop_pre_header
              _
            $region70: #{tpu_custom_call.1} parent=67 // loop_header
              %s470 = sphi 0, %s474
              %p471 = scmp.ge.s32.totalorder %s470, 1
              %s475 = sphi %s437, %s437
              %s476 = sphi %s425, %s425
            $region71: #{tpu_custom_call.1} parent=67 // loop_header_branch
              %473 = sbr.rel (%p471) target = $region75
            $region72: #{tpu_custom_call.1} parent=67 // loop_body
              %v477 = vld [vmem:[%s475] sm:%s468]
              %478 = vst [vmem:[%s476] sm:%s468] %v477
            $region73: #{tpu_custom_call.1} parent=67 // loop_footer
              %s474 = sadd.s32 1, %s470
            $region74: #{tpu_custom_call.1} parent=67 // loop_footer_branch
              %469 = sbr.rel target = $region70
            $region75: #{tpu_custom_call.1} parent=67 // loop_exit
              _
          $region68: #{tpu_custom_call.1} parent=59 // pred_fallthru
            _
          // Predicated region
          $region91: #{tpu_custom_call.1} parent=59 // pred_check
            _
          $region92: #{tpu_custom_call.1} parent=59 // pred_check_branch
            %506 = sbr.rel (0) target = $region94
          $region93: #{tpu_custom_call.1} parent=59 // pred_region
            %507 = vsyncadd [#allocation3], 512
          $region94: #{tpu_custom_call.1} parent=59 // pred_fallthru
            _
          %v508 = vld [vmem:[%s437] sm:$0xff]
          %v509 = vld [vmem:[%s437 + $0x8] sm:$0xff]
          %v510 = vld [vmem:[%s437 + $0x10] sm:$0xff]
          %v511 = vld [vmem:[%s437 + $0x18] sm:$0xff]
          %v512 = vpack.c.bf16 %v510, %v508
          %v513 = vpack.c.bf16 %v511, %v509
          %v514 = vld [vmem:[%s1] sm:$0xf]
          %v515 = vld [vmem:[%s1 + $0x4] sm:$0xf]
          %v516 = vld [vmem:[%s1 + $0x8] sm:$0xf]
          %v517 = vld [vmem:[%s1 + $0xc] sm:$0xf]
          %v518 = vld [vmem:[%s1 + $0x10] sm:$0xf]
          %v519 = vld [vmem:[%s1 + $0x14] sm:$0xf]
          %v520 = vld [vmem:[%s1 + $0x18] sm:$0xf]
          %v521 = vld [vmem:[%s1 + $0x1c] sm:$0xf]
          %v522 = vld [vmem:[%s1 + $0x20] sm:$0xf]
          %v523 = vld [vmem:[%s1 + $0x24] sm:$0xf]
          %v524 = vld [vmem:[%s1 + $0x28] sm:$0xf]
          %v525 = vld [vmem:[%s1 + $0x2c] sm:$0xf]
          %v526 = vld [vmem:[%s1 + $0x30] sm:$0xf]
          %v527 = vld [vmem:[%s1 + $0x34] sm:$0xf]
          %v528 = vld [vmem:[%s1 + $0x38] sm:$0xf]
          %v529 = vld [vmem:[%s1 + $0x3c] sm:$0xf]
          %v530 = vld [vmem:[%s1 + $0x40] sm:$0xf]
          %v531 = vld [vmem:[%s1 + $0x44] sm:$0xf]
          %v532 = vld [vmem:[%s1 + $0x48] sm:$0xf]
          %v533 = vld [vmem:[%s1 + $0x4c] sm:$0xf]
          %v534 = vld [vmem:[%s1 + $0x50] sm:$0xf]
          %v535 = vld [vmem:[%s1 + $0x54] sm:$0xf]
          %v536 = vld [vmem:[%s1 + $0x58] sm:$0xf]
          %v537 = vld [vmem:[%s1 + $0x5c] sm:$0xf]
          %v538 = vld [vmem:[%s1 + $0x60] sm:$0xf]
          %v539 = vld [vmem:[%s1 + $0x64] sm:$0xf]
          %v540 = vld [vmem:[%s1 + $0x68] sm:$0xf]
          %v541 = vld [vmem:[%s1 + $0x6c] sm:$0xf]
          %v542 = vld [vmem:[%s1 + $0x70] sm:$0xf]
          %v543 = vld [vmem:[%s1 + $0x74] sm:$0xf]
          %v544 = vld [vmem:[%s1 + $0x78] sm:$0xf]
          %v545 = vld [vmem:[%s1 + $0x7c] sm:$0xf]
          %v578 = vunpack.c.l.b16 %v514
          %v579 = vunpack.c.l.b16 %v515
          %v580 = vunpack.c.l.b16 %v516
          %v581 = vunpack.c.l.b16 %v517
          %v582 = vunpack.c.l.b16 %v518
          %v583 = vunpack.c.l.b16 %v519
          %v584 = vunpack.c.l.b16 %v520
          %v585 = vunpack.c.l.b16 %v521
          %v586 = vunpack.c.l.b16 %v522
          %v587 = vunpack.c.l.b16 %v523
          %v588 = vunpack.c.l.b16 %v524
          %v589 = vunpack.c.l.b16 %v525
          %v590 = vunpack.c.l.b16 %v526
          %v591 = vunpack.c.l.b16 %v527
          %v592 = vunpack.c.l.b16 %v528
          %v593 = vunpack.c.l.b16 %v529
          %v594 = vunpack.c.l.b16 %v530
          %v595 = vunpack.c.l.b16 %v531
          %v596 = vunpack.c.l.b16 %v532
          %v597 = vunpack.c.l.b16 %v533
          %v598 = vunpack.c.l.b16 %v534
          %v599 = vunpack.c.l.b16 %v535
          %v600 = vunpack.c.l.b16 %v536
          %v601 = vunpack.c.l.b16 %v537
          %v602 = vunpack.c.l.b16 %v538
          %v603 = vunpack.c.l.b16 %v539
          %v604 = vunpack.c.l.b16 %v540
          %v605 = vunpack.c.l.b16 %v541
          %v606 = vunpack.c.l.b16 %v542
          %v607 = vunpack.c.l.b16 %v543
          %v608 = vunpack.c.l.b16 %v544
          %v609 = vunpack.c.l.b16 %v545
          %v610 = vpack.c.b16 %v579, %v578
          %v611 = vpack.c.b16 %v581, %v580
          %v612 = vpack.c.b16 %v583, %v582
          %v613 = vpack.c.b16 %v585, %v584
          %v614 = vpack.c.b16 %v587, %v586
          %v615 = vpack.c.b16 %v589, %v588
          %v616 = vpack.c.b16 %v591, %v590
          %v617 = vpack.c.b16 %v593, %v592
          %v618 = vpack.c.b16 %v595, %v594
          %v619 = vpack.c.b16 %v597, %v596
          %v620 = vpack.c.b16 %v599, %v598
          %v621 = vpack.c.b16 %v601, %v600
          %v622 = vpack.c.b16 %v603, %v602
          %v623 = vpack.c.b16 %v605, %v604
          %v624 = vpack.c.b16 %v607, %v606
          %v625 = vpack.c.b16 %v609, %v608
          %642 = vmatprep.subr.bf16.mxu0 0
          %643 = vmatpush1.bf16.msra.mxu0 %v617
          %644 = vmatprep.subr.bf16.mxu0 0
          %645 = vmatpush1.bf16.msra.mxu0 %v616
          %646 = vmatprep.subr.bf16.mxu0 0
          %647 = vmatpush1.bf16.msra.mxu0 %v615
          %648 = vmatprep.subr.bf16.mxu0 0
          %649 = vmatpush1.bf16.msra.mxu0 %v614
          %650 = vmatprep.subr.bf16.mxu0 0
          %651 = vmatpush1.bf16.msra.mxu0 %v613
          %652 = vmatprep.subr.bf16.mxu0 0
          %653 = vmatpush1.bf16.msra.mxu0 %v612
          %654 = vmatprep.subr.bf16.mxu0 0
          %655 = vmatpush1.bf16.msra.mxu0 %v611
          %656 = vmatprep.subr.bf16.mxu0 0
          %657 = vmatpush1.bf16.msra.mxu0 %v610
          %658 = vmatprep.subr.bf16.mxu0 0
          %659 = vmatpush2.bf16.msra.mxu0 %v625
          %660 = vmatprep.subr.bf16.mxu0 0
          %661 = vmatpush2.bf16.msra.mxu0 %v624
          %662 = vmatprep.subr.bf16.mxu0 0
          %663 = vmatpush2.bf16.msra.mxu0 %v623
          %664 = vmatprep.subr.bf16.mxu0 0
          %665 = vmatpush2.bf16.msra.mxu0 %v622
          %666 = vmatprep.subr.bf16.mxu0 0
          %667 = vmatpush2.bf16.msra.mxu0 %v621
          %668 = vmatprep.subr.bf16.mxu0 0
          %669 = vmatpush2.bf16.msra.mxu0 %v620
          %670 = vmatprep.subr.bf16.mxu0 0
          %671 = vmatpush2.bf16.msra.mxu0 %v619
          %672 = vmatprep.subr.bf16.mxu0 0
          %673 = vmatpush2.bf16.msra.mxu0 %v618
          %674 = vmatprep.mubr.bf16.mxu0 %v513
          %675 = vmatmul.mubr.bf16.gmra.mxu0 %v512
          %v676 = vpop.f32.mrf.mxu0
          %v677 = vadd.f32 0.0, %v676
          %v678 = vpop.f32.mrf.mxu0
          %v679 = vpop.f32.mrf.mxu0
          %v680 = vadd.f32 0.0, %v679
          %v681 = vpop.f32.mrf.mxu0
          %682 = vdwg.mxu0
          %s683 = smul.u32 %s31, 16
          %s684 = scalar_lea.vmem [#allocation2], %s683
          %vm685 = vcmask 523264
          %686 = vst.msk [vmem:[%s684] sm:$0xff] %vm685, %v677
          %687 = vst.msk [vmem:[%s684 + $0x8] sm:$0xff] %vm685, %v680
          %s688 = smul.u32 8, 1
          %s689 = smul.u32 %s688, 2
          %s690 = smul.u32 %s689, 2
          %s691 = sshll.u32 %s690, 4
          %692 = dma.done [#allocation3], %s691
        $region60: #{tpu_custom_call.1} parent=43 // pred_fallthru
          _
        %p693 = scmp.ge.s32.totalorder %s31, 2
        // Predicated region
        $region95: #{tpu_custom_call.1} parent=43 // pred_check
          %p694 = pneg %p693
        $region96: #{tpu_custom_call.1} parent=43 // pred_check_branch
          %696 = sbr.rel (%p694) target = $region98
        $region97: #{tpu_custom_call.1} parent=43 // pred_region
          %v697 = vld [vmem:[%s357] sm:$0xff]
          %v698 = vld [vmem:[%s357 + $0x8] sm:$0xff]
          %v699 = vld [vmem:[#allocation2] sm:$0xff]
          %v700 = vld [vmem:[#allocation2 + $0x8] sm:$0xff]
          %v701 = vld [vmem:[#allocation2 + $0x10] sm:$0xff]
          %v702 = vld [vmem:[#allocation2 + $0x18] sm:$0xff]
          %v703 = vld [vmem:[%s366] sm:$0xf]
          %v704 = vld [vmem:[%s366 + $0x4] sm:$0xf]
          %v705 = vunpack.c.l.bf16 %v703
          %v706 = vunpack.c.l.bf16 %v704
          %vm707 = vcmask 261120
          %v709 = vsel %vm707, %v697, 0
          %v712 = vsel %vm707, %v698, 0
          %714 = vmatprep.subr.mxu0 0.0
          %715 = vmatpush1.msra.mxu0 0.0
          %716 = vmatprep.subr.mxu0 0.0
          %717 = vmatpush1.msra.mxu0 0.0
          %718 = vmatprep.subr.mxu0 0.0
          %719 = vmatpush1.msra.mxu0 0.0
          %720 = vmatprep.subr.mxu0 0.0
          %721 = vmatpush1.msra.mxu0 0.0
          %722 = vmatprep.subr.mxu0 0.0
          %723 = vmatpush1.msra.mxu0 0.0
          %724 = vmatprep.subr.mxu0 0.0
          %725 = vmatpush1.msra.mxu0 0.0
          %726 = vmatprep.subr.mxu0 0.0
          %727 = vmatpush1.msra.mxu0 0.0
          %728 = vmatprep.subr.mxu0 0.0
          %729 = vmatpush1.msra.mxu0 0.0
          %730 = vmatprep.subr.mxu0 0.0
          %731 = vmatpush1.msra.mxu0 0.0
          %732 = vmatprep.subr.mxu0 0.0
          %733 = vmatpush1.msra.mxu0 0.0
          %734 = vmatprep.subr.mxu0 0.0
          %735 = vmatpush1.msra.mxu0 0.0
          %736 = vmatprep.subr.mxu0 0.0
          %737 = vmatpush1.msra.mxu0 0.0
          %738 = vmatprep.subr.mxu0 0.0
          %739 = vmatpush1.msra.mxu0 %v702
          %740 = vmatprep.subr.mxu0 0.0
          %741 = vmatpush1.msra.mxu0 %v701
          %742 = vmatprep.subr.mxu0 0.0
          %743 = vmatpush1.msra.mxu0 %v700
          %744 = vmatprep.subr.mxu0 0.0
          %745 = vmatpush1.msra.mxu0 %v699
          %746 = vmatprep.subr.mxu0 0.0
          %747 = vmatpush2.msra.mxu0 0.0
          %748 = vmatprep.subr.mxu0 0.0
          %749 = vmatpush2.msra.mxu0 0.0
          %750 = vmatprep.subr.mxu0 0.0
          %751 = vmatpush2.msra.mxu0 0.0
          %752 = vmatprep.subr.mxu0 0.0
          %753 = vmatpush2.msra.mxu0 0.0
          %754 = vmatprep.subr.mxu0 0.0
          %755 = vmatpush2.msra.mxu0 0.0
          %756 = vmatprep.subr.mxu0 0.0
          %757 = vmatpush2.msra.mxu0 0.0
          %758 = vmatprep.subr.mxu0 0.0
          %759 = vmatpush2.msra.mxu0 0.0
          %760 = vmatprep.subr.mxu0 0.0
          %761 = vmatpush2.msra.mxu0 0.0
          %762 = vmatprep.subr.mxu0 0.0
          %763 = vmatpush2.msra.mxu0 0.0
          %764 = vmatprep.subr.mxu0 0.0
          %765 = vmatpush2.msra.mxu0 0.0
          %766 = vmatprep.subr.mxu0 0.0
          %767 = vmatpush2.msra.mxu0 0.0
          %768 = vmatprep.subr.mxu0 0.0
          %769 = vmatpush2.msra.mxu0 0.0
          %770 = vmatprep.subr.mxu0 0.0
          %771 = vmatpush2.msra.mxu0 0.0
          %772 = vmatprep.subr.mxu0 0.0
          %773 = vmatpush2.msra.mxu0 0.0
          %774 = vmatprep.subr.mxu0 0.0
          %775 = vmatpush2.msra.mxu0 0.0
          %776 = vmatprep.subr.mxu0 0.0
          %777 = vmatpush2.msra.mxu0 0.0
          %778 = vmatprep.mubr.f32.mxu0 0.0
          %779 = vmatmul.mubr.f32.gmra.mxu0 %v709
          %v780 = vpop.f32.mrf.mxu0
          %v781 = vadd.f32 %v705, %v780
          %v782 = vpop.f32.mrf.mxu0
          %783 = vmatprep.mubr.f32.mxu0 0.0
          %784 = vmatmul.mubr.f32.gmra.mxu0 %v712
          %v785 = vpop.f32.mrf.mxu0
          %v786 = vadd.f32 %v706, %v785
          %v787 = vpop.f32.mrf.mxu0
          %788 = vdwg.mxu0
          %v789 = vmax.f32 %v781, 0.0
          %v790 = vmax.f32 %v786, 0.0
          %v791 = vpack.c.bf16 %v790, %v789
          %v792 = vld [vmem:[%s375] sm:$0xf]
          %v793 = vld [vmem:[%s375 + $0x4] sm:$0xf]
          %v796 = vunpack.c.l.b16 %v792
          %v797 = vunpack.c.l.b16 %v793
          %v798 = vpack.c.b16 %v797, %v796
          %v800 = vmul.bf16 %v791, %v798
          %v801 = vld [vmem:[%s5] sm:$0xff]
          %v802 = vld [vmem:[%s5 + $0x8] sm:$0xff]
          %v803 = vld [vmem:[%s5 + $0x10] sm:$0xff]
          %v804 = vld [vmem:[%s5 + $0x18] sm:$0xff]
          %v805 = vld [vmem:[%s5 + $0x20] sm:$0xff]
          %v806 = vld [vmem:[%s5 + $0x28] sm:$0xff]
          %v807 = vld [vmem:[%s5 + $0x30] sm:$0xff]
          %v808 = vld [vmem:[%s5 + $0x38] sm:$0xff]
          %v817 = vunpack.c.l.b16 %v801
          %v818 = vunpack.c.h.b16 %v801
          %v819 = vunpack.c.l.b16 %v802
          %v820 = vunpack.c.h.b16 %v802
          %v821 = vunpack.c.l.b16 %v803
          %v822 = vunpack.c.h.b16 %v803
          %v823 = vunpack.c.l.b16 %v804
          %v824 = vunpack.c.h.b16 %v804
          %v825 = vunpack.c.l.b16 %v805
          %v826 = vunpack.c.h.b16 %v805
          %v827 = vunpack.c.l.b16 %v806
          %v828 = vunpack.c.h.b16 %v806
          %v829 = vunpack.c.l.b16 %v807
          %v830 = vunpack.c.h.b16 %v807
          %v831 = vunpack.c.l.b16 %v808
          %v832 = vunpack.c.h.b16 %v808
          %v833 = vpack.c.b16 %v819, %v817
          %v834 = vpack.c.b16 %v820, %v818
          %v835 = vpack.c.b16 %v823, %v821
          %v836 = vpack.c.b16 %v824, %v822
          %v837 = vpack.c.b16 %v827, %v825
          %v838 = vpack.c.b16 %v828, %v826
          %v839 = vpack.c.b16 %v831, %v829
          %v840 = vpack.c.b16 %v832, %v830
          %vm849 = vcmask 523264
          %v851 = vsel %vm849, %v800, 0
          %853 = vmatprep.subr.bf16.mxu0 0
          %854 = vmatpush1.bf16.msra.mxu0 0
          %855 = vmatprep.subr.bf16.mxu0 0
          %856 = vmatpush1.bf16.msra.mxu0 0
          %857 = vmatprep.subr.bf16.mxu0 0
          %858 = vmatpush1.bf16.msra.mxu0 0
          %859 = vmatprep.subr.bf16.mxu0 0
          %860 = vmatpush1.bf16.msra.mxu0 0
          %861 = vmatprep.subr.bf16.mxu0 %v840
          %862 = vmatpush1.bf16.msra.mxu0 %v839
          %863 = vmatprep.subr.bf16.mxu0 %v838
          %864 = vmatpush1.bf16.msra.mxu0 %v837
          %865 = vmatprep.subr.bf16.mxu0 %v836
          %866 = vmatpush1.bf16.msra.mxu0 %v835
          %867 = vmatprep.subr.bf16.mxu0 %v834
          %868 = vmatpush1.bf16.msra.mxu0 %v833
          %869 = vmatprep.subr.bf16.mxu0 0
          %870 = vmatpush2.bf16.msra.mxu0 0
          %871 = vmatprep.subr.bf16.mxu0 0
          %872 = vmatpush2.bf16.msra.mxu0 0
          %873 = vmatprep.subr.bf16.mxu0 0
          %874 = vmatpush2.bf16.msra.mxu0 0
          %875 = vmatprep.subr.bf16.mxu0 0
          %876 = vmatpush2.bf16.msra.mxu0 0
          %877 = vmatprep.subr.bf16.mxu0 0
          %878 = vmatpush2.bf16.msra.mxu0 0
          %879 = vmatprep.subr.bf16.mxu0 0
          %880 = vmatpush2.bf16.msra.mxu0 0
          %881 = vmatprep.subr.bf16.mxu0 0
          %882 = vmatpush2.bf16.msra.mxu0 0
          %883 = vmatprep.subr.bf16.mxu0 0
          %884 = vmatpush2.bf16.msra.mxu0 0
          %885 = vmatprep.mubr.bf16.mxu0 0
          %886 = vmatmul.mubr.bf16.gmra.mxu0 %v851
          %v887 = vpop.f32.mrf.mxu0
          %v888 = vadd.f32 0.0, %v887
          %v889 = vpop.f32.mrf.mxu0
          %v890 = vadd.f32 0.0, %v889
          %v891 = vpop.f32.mrf.mxu0
          %v892 = vadd.f32 0.0, %v891
          %v893 = vpop.f32.mrf.mxu0
          %v894 = vadd.f32 0.0, %v893
          %895 = vdwg.mxu0
          %896 = vst [vmem:[%s425] sm:$0xff] %v888
          %897 = vst [vmem:[%s425 + $0x8] sm:$0xff] %v890
          %898 = vst [vmem:[%s425 + $0x10] sm:$0xff] %v892
          %899 = vst [vmem:[%s425 + $0x18] sm:$0xff] %v894
        $region98: #{tpu_custom_call.1} parent=43 // pred_fallthru
          _
        %s900 = sand.u32 %s218, 1
        %s901 = scalar_lea.sflag [#allocation6], %s900
        %s902 = sand.u32 %s218, 1
        %s903 = smul.addr %s902, 32
        %s904 = scalar_lea.vmem [#allocation10], %s903
        // Predicated region
        $region99: #{tpu_custom_call.1} parent=43 // pred_check
          %p905 = pneg %p228
        $region100: #{tpu_custom_call.1} parent=43 // pred_check_branch
          %907 = sbr.rel (%p905) target = $region102
        $region101: #{tpu_custom_call.1} parent=43 // pred_region
          %s908 = smul.u32 2, %s31
          %s910 = ssub.s32 512, 512
          %911 = vsyncadd %s901, %s910
          %s912 = smul.addr %s908, 2
          %s913 = smul.addr %s30, 16
          %s914 = sadd.s32 %s912, %s913
          %s915 = smul.addr %s914, 128
          %s916 = scalar_lea.hbm %s6, %s915
          %s917 = sshll.u32 %s904, 4
          %s918 = int_to_ptr.vmem [resolvable:$true] %s917
          %923 = dma.vmem_to_hbm [thread:$0]  %s918, 512, %s916, %s901, 256, 256, 16
        $region102: #{tpu_custom_call.1} parent=43 // pred_fallthru
          _
      $region44: #{tpu_custom_call.1} parent=5 // pred_fallthru
        _
      %p924 = scmp.le.s32.totalorder 2, %s21
      // Predicated region
      $region103: #{tpu_custom_call.1} parent=5 // pred_check
        %p925 = pneg %p924
      $region104: #{tpu_custom_call.1} parent=5 // pred_check_branch
        %927 = sbr.rel (%p925) target = $region106
      $region105: #{tpu_custom_call.1} parent=5 // pred_region
        %s928 = ssub.s32 %s21, 2
        // Predicated region
        $region107: #{tpu_custom_call.1} parent=105 // pred_check
          %p929 = pneg %p234
        $region108: #{tpu_custom_call.1} parent=105 // pred_check_branch
          %931 = sbr.rel (%p929) target = $region110
        $region109: #{tpu_custom_call.1} parent=105 // pred_region
          %s932 = sand.u32 %s219, 1
          %s933 = scalar_lea.sflag [#allocation6], %s932
          %s934 = sand.u32 %s219, 1
          %s935 = smul.addr %s934, 32
          %s936 = scalar_lea.vmem [#allocation10], %s935
          %937 = dma.done %s933, 512
        $region110: #{tpu_custom_call.1} parent=105 // pred_fallthru
          _
      $region106: #{tpu_custom_call.1} parent=5 // pred_fallthru
        _
    $region6: #{tpu_custom_call.1} parent=1 // loop_footer
      %s25 = sadd.s32 1, %s21
    $region7: #{tpu_custom_call.1} parent=1 // loop_footer_branch
      %20 = sbr.rel target = $region3
    $region8: #{tpu_custom_call.1} parent=1 // loop_exit
      _
    %938 = vsyncpa [#allocation5], 1
    %s939 = scalar_lea.sflag [#allocation5], 1
    %940 = vsyncpa %s939, 1
    %941 = vsyncpa [#allocation8], 1
    %s942 = scalar_lea.sflag [#allocation8], 1
    %943 = vsyncpa %s942, 1
    %944 = vsyncpa [#allocation6], 1
    %s945 = scalar_lea.sflag [#allocation6], 1
    %946 = vsyncpa %s945, 1
  %947 = vsyncmov [#allocation3]
  %s948 = vpop.sfrf %947
  %p949 = scmp.eq.s32.totalorder %s948, 0
  %p950 = pneg %p949
  %952 = shalt.err (%p950)

</llo_original>
